<compile_context>
chip_gen: v5e
topology: v5e:2x2
jax: 0.10.0
libtpu: 0.0.40
codegen_flags: <defaults>
</compile_context>

<pallas_src>
import functools

import jax
import jax.numpy as jnp
from jax.experimental import pallas as pl
from jax.experimental.pallas import tpu as pltpu


def _round_up(x, m):
    return ((x + m - 1) // m) * m


def _pick_hw_tile(hw, max_tile):
    """Largest multiple of 128 <= max_tile that divides round_up(hw, 128);
    fall back to max_tile (with zero-padding) if that tile would be tiny."""
    hw128 = _round_up(hw, 128)
    units = hw128 // 128
    best = 128
    for k in range(max(1, min(max_tile // 128, units)), 0, -1):
        if units % k == 0:
            best = k * 128
            break
    if best < 512 and hw128 > max_tile:
        best = max_tile  # accept a little padding to keep tiles >= 512 lanes
    return best


def _pick_b_tile(b, max_tile):
    """Batch tile: either the full batch, or a multiple of 8 dividing B."""
    if b <= max_tile:
        return b
    for d in range(min(max_tile, b), 0, -1):
        if b % d == 0 and d % 8 == 0:
            return d
    return b  # no friendly divisor -> single batch block


def _lambda_mse_kernel(pred_ref, gt_ref, tw_ref, out_ref, acc_ref, *, inv_norm):
    hw = pl.program_id(1)

    @pl.when(hw == 0)
    def _init():
        acc_ref[...] = jnp.zeros_like(acc_ref)

    # Streaming reduction: f32 accumulation of (pred - gt)^2 over the HW tile.
    d = pred_ref[...].astype(jnp.float32) - gt_ref[...].astype(jnp.float32)
    acc_ref[...] += jnp.sum(d * d, axis=-1)                     # (TB, J)

    @pl.when(hw == pl.num_programs(1) - 1)
    def _finalize():
        w = tw_ref[...]                                         # (TB, J) f32
        per_joint = acc_ref[...] * (w * w)                      # (TB, J)
        out_ref[...] = (
            jnp.sum(per_joint, axis=-1, keepdims=True) * jnp.float32(inv_norm)
        )


def joints_lambda_mse_loss(output, target, target_weight, *,
                           use_target_weight=True,
                           block_b=8, block_hw=2048):
    """output/target: (B, J, H, W) any float dtype; target_weight: (B, J, 1).

    Returns the per-sample loss vector of shape (B,), float32 (matches the
    PyTorch module, which returns loss.mean(dim=1) / num_joints)."""
    B, J, H, W = output.shape
    HW = H * W
    pred = output.reshape(B, J, HW)          # native dtype, no up-cast copy
    gt = target.reshape(B, J, HW)

    if use_target_weight:
        tw = target_weight.reshape(B, J).astype(jnp.float32)
    else:
        tw = jnp.ones((B, J), jnp.float32)

    # ---- tiling ------------------------------------------------------------
    tb = _pick_b_tile(B, block_b)
    thw = _pick_hw_tile(HW, block_hw)
    hw_pad = _round_up(HW, thw)
    if hw_pad != HW:
        pad = hw_pad - HW
        # identical zero padding of pred & gt -> padded lanes contribute 0
        pred = jnp.pad(pred, ((0, 0), (0, 0), (0, pad)))
        gt = jnp.pad(gt, ((0, 0), (0, 0), (0, pad)))
    nb = B // tb
    nhw = hw_pad // thw

    itemsize = jnp.dtype(pred.dtype).itemsize
    in_block_bytes = tb * J * thw * itemsize
    # 2 inputs x 2 pipeline buffers + tiny weight/out/scratch tiles + headroom,
    # capped well below physical VMEM on every generation (v7x = 64 MiB/TC).
    vmem_limit = int(min(max(4 * in_block_bytes + (4 << 20), 16 << 20), 48 << 20))

    cost = pl.CostEstimate(
        flops=3 * B * J * HW,                       # sub + mul + add per element
        transcendentals=0,
        bytes_accessed=2 * B * J * hw_pad * itemsize + B * J * 4 + B * 4,
    )

    kernel = functools.partial(_lambda_mse_kernel, inv_norm=0.5 / (J * HW))

    out = pl.pallas_call(
        kernel,
        out_shape=jax.ShapeDtypeStruct((B, 1), jnp.float32),
        grid_spec=pltpu.PrefetchScalarGridSpec(
            num_scalar_prefetch=0,
            grid=(nb, nhw),                          # reduction (HW) axis last
            in_specs=[
                pl.BlockSpec((tb, J, thw), lambda b, hw: (b, 0, hw)),
                pl.BlockSpec((tb, J, thw), lambda b, hw: (b, 0, hw)),
                pl.BlockSpec((tb, J), lambda b, hw: (b, 0)),
            ],
            out_specs=pl.BlockSpec((tb, 1), lambda b, hw: (b, 0)),
            scratch_shapes=[pltpu.VMEM((tb, J), jnp.float32)],
        ),
        compiler_params=pltpu.CompilerParams(
            dimension_semantics=("parallel", "arbitrary"),
            vmem_limit_bytes=vmem_limit,
        ),
        cost_estimate=cost,
    )(pred, gt, tw)
    return out[:, 0]


def _reference(output, target, target_weight, use_target_weight=True):
    """Pure-JAX mirror of the PyTorch forward (elementwise accumulation form)."""
    B, J = output.shape[:2]
    pred = output.reshape(B, J, -1).astype(jnp.float32)
    gt = target.reshape(B, J, -1).astype(jnp.float32)
    if use_target_weight:
        w = target_weight.reshape(B, J, 1).astype(jnp.float32)
    else:
        w = jnp.ones((B, J, 1), jnp.float32)
    elem = 0.5 * (pred * w - gt * w) ** 2            # (B, J, HW)
    loss_bhw = jnp.sum(elem, axis=1)                 # sum over joints -> (B, HW)
    return jnp.mean(loss_bhw, axis=1) / J            # (B,)


if __name__ == "__main__":
    key = jax.random.PRNGKey(0)
    B, J, H, W = 2, 16, 16, 16
    k1, k2, k3 = jax.random.split(key, 3)
    output = jax.random.normal(k1, (B, J, H, W), dtype=jnp.float32)
    target = jax.random.normal(k2, (B, J, H, W), dtype=jnp.float32)
    target_weight = jax.random.uniform(k3, (B, J, 1), dtype=jnp.float32)

    # float32, with target weight
    res = joints_lambda_mse_loss(output, target, target_weight,
                                 use_target_weight=True)
    res = jax.block_until_ready(res)
    ref = _reference(output, target, target_weight, use_target_weight=True)
    assert res.shape == (B,)
    assert jnp.allclose(res, ref, rtol=1e-5, atol=1e-6), (res, ref)

    # float32, no target weight
    res2 = joints_lambda_mse_loss(output, target, target_weight,
                                  use_target_weight=False)
    res2 = jax.block_until_ready(res2)
    ref2 = _reference(output, target, target_weight, use_target_weight=False)
    assert jnp.allclose(res2, ref2, rtol=1e-5, atol=1e-6), (res2, ref2)

    # bf16 activations streamed in native dtype (half the HBM traffic),
    # f32 accumulation inside the kernel.
    out_bf = output.astype(jnp.bfloat16)
    tgt_bf = target.astype(jnp.bfloat16)
    res3 = joints_lambda_mse_loss(out_bf, tgt_bf, target_weight,
                                  use_target_weight=True)
    res3 = jax.block_until_ready(res3)
    ref3 = _reference(out_bf, tgt_bf, target_weight, use_target_weight=True)
    assert jnp.allclose(res3, ref3, rtol=1e-4, atol=1e-6), (res3, ref3)

    print("KERNEL_OK")
</pallas_src>

<mosaic_0001>
module attributes {stable_mosaic.version = 11 : i64} {
  func.func @_lambda_mse_kernel(%arg0: i32, %arg1: i32, %arg2: memref<2x16x256xf32, #tpu.memory_space<vmem>>, %arg3: memref<2x16x256xf32, #tpu.memory_space<vmem>>, %arg4: memref<2x16xf32, #tpu.memory_space<vmem>>, %arg5: memref<2x1xf32, #tpu.memory_space<vmem>>, %arg6: memref<2x16xf32, #tpu.memory_space<vmem>>) attributes {dimension_semantics = [#tpu.dimension_semantics<parallel>, #tpu.dimension_semantics<arbitrary>], iteration_bounds = array<i64: 1, 1>, scalar_prefetch = 0 : i64, scratch_operands = 1 : i64, tpu.core_type = #tpu.core_type<tc>, window_params = [{transform_indices = @transform_0, window_bounds = array<i64: 2, 16, 256>}, {transform_indices = @transform_1, window_bounds = array<i64: 2, 16, 256>}, {transform_indices = @transform_2, window_bounds = array<i64: 2, 16>}, {transform_indices = @transform_3, window_bounds = array<i64: 2, 1>}]} {
    %c0_i32 = arith.constant 0 : i32
    %0 = arith.cmpi eq, %arg1, %c0_i32 : i32
    %1 = arith.extui %0 : i1 to i32
    %c0_i32_0 = arith.constant 0 : i32
    %2 = arith.cmpi ne, %1, %c0_i32_0 : i32
    scf.if %2 {
      %cst_12 = arith.constant 0.000000e+00 : f32
      %14 = vector.broadcast %cst_12 : f32 to vector<2x16xf32>
      %c0_13 = arith.constant 0 : index
      %c0_14 = arith.constant 0 : index
      %15 = vector.load %arg6[%c0_13, %c0_14] : memref<2x16xf32, #tpu.memory_space<vmem>>, vector<2x16xf32>
      tpu.vector_store %arg6[%c0_13, %c0_14], %14 {strides = array<i32>} : memref<2x16xf32, #tpu.memory_space<vmem>>, vector<2x16xf32>,
    } else {
    }
    %c0 = arith.constant 0 : index
    %c0_1 = arith.constant 0 : index
    %c0_2 = arith.constant 0 : index
    %3 = vector.load %arg2[%c0, %c0_1, %c0_2] : memref<2x16x256xf32, #tpu.memory_space<vmem>>, vector<2x16x256xf32>
    %c0_3 = arith.constant 0 : index
    %c0_4 = arith.constant 0 : index
    %c0_5 = arith.constant 0 : index
    %4 = vector.load %arg3[%c0_3, %c0_4, %c0_5] : memref<2x16x256xf32, #tpu.memory_space<vmem>>, vector<2x16x256xf32>
    %5 = arith.subf %3, %4 : vector<2x16x256xf32>
    %c0_6 = arith.constant 0 : index
    %c0_7 = arith.constant 0 : index
    %6 = vector.load %arg6[%c0_6, %c0_7] : memref<2x16xf32, #tpu.memory_space<vmem>>, vector<2x16xf32>
    %7 = arith.mulf %5, %5 : vector<2x16x256xf32>
    %cst = arith.constant dense<0.000000e+00> : vector<2x16xf32>
    %8 = vector.multi_reduction <add>, %7, %cst [2] : vector<2x16x256xf32> to vector<2x16xf32>
    %9 = arith.addf %6, %8 : vector<2x16xf32>
    %c0_8 = arith.constant 0 : index
    %c0_9 = arith.constant 0 : index
    %10 = vector.load %arg6[%c0_8, %c0_9] : memref<2x16xf32, #tpu.memory_space<vmem>>, vector<2x16xf32>
    tpu.vector_store %arg6[%c0_8, %c0_9], %9 {strides = array<i32>} : memref<2x16xf32, #tpu.memory_space<vmem>>, vector<2x16xf32>,
    %c0_i32_10 = arith.constant 0 : i32
    %11 = arith.cmpi eq, %arg1, %c0_i32_10 : i32
    %12 = arith.extui %11 : i1 to i32
    %c0_i32_11 = arith.constant 0 : i32
    %13 = arith.cmpi ne, %12, %c0_i32_11 : i32
    scf.if %13 {
      %c0_12 = arith.constant 0 : index
      %c0_13 = arith.constant 0 : index
      %14 = vector.load %arg4[%c0_12, %c0_13] : memref<2x16xf32, #tpu.memory_space<vmem>>, vector<2x16xf32>
      %c0_14 = arith.constant 0 : index
      %c0_15 = arith.constant 0 : index
      %15 = vector.load %arg6[%c0_14, %c0_15] : memref<2x16xf32, #tpu.memory_space<vmem>>, vector<2x16xf32>
      %16 = arith.mulf %14, %14 : vector<2x16xf32>
      %17 = arith.mulf %15, %16 : vector<2x16xf32>
      %cst_16 = arith.constant dense<0.000000e+00> : vector<2xf32>
      %18 = vector.multi_reduction <add>, %17, %cst_16 [1] : vector<2x16xf32> to vector<2xf32>
      %19 = vector.shape_cast %18 : vector<2xf32> to vector<2x1xf32>
      %cst_17 = arith.constant 1.22070313E-4 : f32
      %20 = vector.broadcast %cst_17 : f32 to vector<2x1xf32>
      %21 = arith.mulf %19, %20 : vector<2x1xf32>
      %c0_18 = arith.constant 0 : index
      %c0_19 = arith.constant 0 : index
      %22 = vector.load %arg5[%c0_18, %c0_19] : memref<2x1xf32, #tpu.memory_space<vmem>>, vector<2x1xf32>
      tpu.vector_store %arg5[%c0_18, %c0_19], %21 {strides = array<i32>} : memref<2x1xf32, #tpu.memory_space<vmem>>, vector<2x1xf32>,
    } else {
    }
    return
  }
  func.func @transform_0(%arg0: i32, %arg1: i32) -> (i32, i32, i32) {
    %c0_i32 = arith.constant 0 : i32
    %c0_i32_0 = arith.constant 0 : i32
    return %arg0, %c0_i32, %arg1 : i32, i32, i32
  }
  func.func @transform_1(%arg0: i32, %arg1: i32) -> (i32, i32, i32) {
    %c0_i32 = arith.constant 0 : i32
    %c0_i32_0 = arith.constant 0 : i32
    return %arg0, %c0_i32, %arg1 : i32, i32, i32
  }
  func.func @transform_2(%arg0: i32, %arg1: i32) -> (i32, i32) {
    %c0_i32 = arith.constant 0 : i32
    %c0_i32_0 = arith.constant 0 : i32
    return %arg0, %c0_i32 : i32, i32
  }
  func.func @transform_3(%arg0: i32, %arg1: i32) -> (i32, i32) {
    %c0_i32 = arith.constant 0 : i32
    %c0_i32_0 = arith.constant 0 : i32
    return %arg0, %c0_i32 : i32, i32
  }
}

</mosaic_0001>

<llo_original>
// kernel: tpu_custom_call.1
$region0: #{tpu_custom_call.1}
  #allocation0 [shape = 'u32[]', space=smem, size = 0x4, offset = 0x4, fixed_abs, tag = 'smem constant byte address 0x4 - core index']
  #allocation1 [shape = 'u32[72,128]{1,0:T(1,128)}', space=vmem, size = 0x9000, scoped, tag = 'internal scratch']
  #allocation2 [shape = 'f32[2,16]{1,0:T(2,128)}', space=vmem, size = 0x400, scoped, tag = 'scratch operand']
  %s0 = inlined_call_operand.hbm [shape: f32[2,16,256], index: 0, kind: input, shape index: {}]
  %s1 = inlined_call_operand.hbm [shape: f32[2,16,256], index: 1, kind: input, shape index: {}]
  %s2 = inlined_call_operand.hbm [shape: f32[2,16], index: 2, kind: input, shape index: {}]
  %s3 = inlined_call_operand.vmem [shape: f32[2,1], index: 3, kind: output, shape index: {}]
  %s4 = sld [smem:[#allocation0]]
  $region42: #{tpu_custom_call.1} parent=0
    _
  %s6 = ssub.s32 1, %s4
  %s7 = scalar_select 0, %s6, %s4
  $region1: #{tpu_custom_call.1} parent=0
    #allocation3 [shape = 'u8[32768]{0}', space=vmem, size = 0x8000, scoped, tag = 'input window, operand 0, single buffered']
    #allocation4 [shape = 's32[1]{0}', space=sflag, size = 0x4, scoped, tag = 'scoped memory for tpu_custom_call.1']
    #allocation5 [shape = 'u8[32768]{0}', space=vmem, size = 0x8000, scoped, tag = 'input window, operand 1, single buffered']
    #allocation6 [shape = 's32[1]{0}', space=sflag, size = 0x4, scoped, tag = 'scoped memory for tpu_custom_call.1']
    #allocation7 [shape = 'u8[1024]{0}', space=vmem, size = 0x400, scoped, tag = 'input window, operand 2, single buffered']
    %8 = vsyncpa [#allocation4], 0
    %9 = vsyncpa [#allocation6], 0
    // Predicated region
    $region2: #{tpu_custom_call.1} parent=1 // pred_check
      _
    $region3: #{tpu_custom_call.1} parent=1 // pred_check_branch
      %11 = sbr.rel (0) target = $region5
    $region4: #{tpu_custom_call.1} parent=1 // pred_region
      %13 = vsyncadd [#allocation4], 0
      %s14 = sshll.u32 %s0, 4
      %s15 = int_to_ptr.hbm [resolvable:$true] %s14
      %s16 = sshll.u32 [#allocation3], 4
      %s17 = int_to_ptr.vmem [resolvable:$true] %s16
      %22 = dma.hbm_to_vmem [thread:$0]  %s15, 1024, %s17, [#allocation4], 256, 256, 16
    $region5: #{tpu_custom_call.1} parent=1 // pred_fallthru
      _
    // Predicated region
    $region6: #{tpu_custom_call.1} parent=1 // pred_check
      _
    $region7: #{tpu_custom_call.1} parent=1 // pred_check_branch
      %24 = sbr.rel (0) target = $region9
    $region8: #{tpu_custom_call.1} parent=1 // pred_region
      %26 = vsyncadd [#allocation6], 0
      %s27 = sshll.u32 %s1, 4
      %s28 = int_to_ptr.hbm [resolvable:$true] %s27
      %s29 = sshll.u32 [#allocation5], 4
      %s30 = int_to_ptr.vmem [resolvable:$true] %s29
      %35 = dma.hbm_to_vmem [thread:$0]  %s28, 1024, %s30, [#allocation6], 256, 256, 16
    $region9: #{tpu_custom_call.1} parent=1 // pred_fallthru
      _
    // Predicated region
    $region10: #{tpu_custom_call.1} parent=1 // pred_check
      _
    $region11: #{tpu_custom_call.1} parent=1 // pred_check_branch
      %37 = sbr.rel (0) target = $region13
    $region12: #{tpu_custom_call.1} parent=1 // pred_region
      %39 = vsyncadd [#allocation6], 0
      %s41 = sshll.u32 %s2, 4
      %s42 = int_to_ptr.hbm [resolvable:$true] %s41
      %s43 = sshll.u32 [#allocation7], 4
      %s44 = int_to_ptr.vmem [resolvable:$true] %s43
      %46 = dma.hbm_to_vmem [thread:$0]  %s42, 32, %s44, [#allocation6]
    $region13: #{tpu_custom_call.1} parent=1 // pred_fallthru
      _
    // Predicated region
    $region14: #{tpu_custom_call.1} parent=1 // pred_check
      _
    $region15: #{tpu_custom_call.1} parent=1 // pred_check_branch
      %48 = sbr.rel (0) target = $region17
    $region16: #{tpu_custom_call.1} parent=1 // pred_region
      %50 = dma.done [#allocation4], 1024
    $region17: #{tpu_custom_call.1} parent=1 // pred_fallthru
      _
    // Predicated region
    $region18: #{tpu_custom_call.1} parent=1 // pred_check
      _
    $region19: #{tpu_custom_call.1} parent=1 // pred_check_branch
      %52 = sbr.rel (0) target = $region21
    $region20: #{tpu_custom_call.1} parent=1 // pred_region
      %54 = dma.done [#allocation6], 1024
    $region21: #{tpu_custom_call.1} parent=1 // pred_fallthru
      _
    // Predicated region
    $region22: #{tpu_custom_call.1} parent=1 // pred_check
      _
    $region23: #{tpu_custom_call.1} parent=1 // pred_check_branch
      %56 = sbr.rel (0) target = $region25
    $region24: #{tpu_custom_call.1} parent=1 // pred_region
      %58 = dma.done [#allocation6], 32
    $region25: #{tpu_custom_call.1} parent=1 // pred_fallthru
      _
    %p59 = scmp.eq.s32.totalorder 0, 0
    // Predicated region
    $region26: #{tpu_custom_call.1} parent=1 // pred_check
      %p60 = pneg %p59
    $region27: #{tpu_custom_call.1} parent=1 // pred_check_branch
      %62 = sbr.rel (%p60) target = $region29
    $region28: #{tpu_custom_call.1} parent=1 // pred_region
      %vm63 = vcmask 123904
      %64 = vst.msk [vmem:[#allocation2] sm:$0x3] %vm63, 0.0
    $region29: #{tpu_custom_call.1} parent=1 // pred_fallthru
      _
    %v65 = vld [vmem:[#allocation3] sm:$0xff]
    %v66 = vld [vmem:[#allocation3 + $0x8] sm:$0xff]
    %v67 = vld [vmem:[#allocation3 + $0x10] sm:$0xff]
    %v68 = vld [vmem:[#allocation3 + $0x18] sm:$0xff]
    %v69 = vld [vmem:[#allocation3 + $0x20] sm:$0xff]
    %v70 = vld [vmem:[#allocation3 + $0x28] sm:$0xff]
    %v71 = vld [vmem:[#allocation3 + $0x30] sm:$0xff]
    %v72 = vld [vmem:[#allocation3 + $0x38] sm:$0xff]
    %v73 = vld [vmem:[#allocation5] sm:$0xff]
    %v74 = vld [vmem:[#allocation5 + $0x8] sm:$0xff]
    %v75 = vld [vmem:[#allocation5 + $0x10] sm:$0xff]
    %v76 = vld [vmem:[#allocation5 + $0x18] sm:$0xff]
    %v77 = vld [vmem:[#allocation5 + $0x20] sm:$0xff]
    %v78 = vld [vmem:[#allocation5 + $0x28] sm:$0xff]
    %v79 = vld [vmem:[#allocation5 + $0x30] sm:$0xff]
    %v80 = vld [vmem:[#allocation5 + $0x38] sm:$0xff]
    %v81 = vsub.f32 %v65, %v73
    %v82 = vsub.f32 %v66, %v74
    %v83 = vsub.f32 %v67, %v75
    %v84 = vsub.f32 %v68, %v76
    %v85 = vsub.f32 %v69, %v77
    %v86 = vsub.f32 %v70, %v78
    %v87 = vsub.f32 %v71, %v79
    %v88 = vsub.f32 %v72, %v80
    %v89 = vld [vmem:[#allocation2] sm:$0x3]
    %v90 = vmul.f32 %v81, %v81
    %v91 = vmul.f32 %v82, %v82
    %v92 = vmul.f32 %v83, %v83
    %v93 = vmul.f32 %v84, %v84
    %v94 = vmul.f32 %v85, %v85
    %v95 = vmul.f32 %v86, %v86
    %v96 = vmul.f32 %v87, %v87
    %v97 = vmul.f32 %v88, %v88
    %v98 = vadd.f32 %v90, %v91
    %99 = vadd.xlane.f32.xlu0 %v98
    %v100 = vpop.xlane.xlu0 %99
    %v101 = vadd.f32 %v92, %v93
    %102 = vadd.xlane.f32.xlu0 %v101
    %v103 = vpop.xlane.xlu0 %102
    %v104 = vadd.f32 %v94, %v95
    %105 = vadd.xlane.f32.xlu0 %v104
    %v106 = vpop.xlane.xlu0 %105
    %v107 = vadd.f32 %v96, %v97
    %108 = vadd.xlane.f32.xlu0 %v107
    %v109 = vpop.xlane.xlu0 %108
    %v114 = vlaneseq
    %v115 = vand.u32 %v114, 127
    %v116 = vperm.slane %v100, %v115
    %v117 = vadd.s32 %v115, 4294967288
    %v118 = vperm.slane %v103, %v117
    %vm119 = vcmask 130112
    %v120 = vsel %vm119, %v118, %v116
    %v121 = vperm.slane %v106, %v115
    %v122 = vperm.slane %v109, %v117
    %v123 = vsel %vm119, %v122, %v121
    %vm124 = vcmask 1041409
    %v125 = vsel %vm124, %v123, %v120
    %v127 = vadd.f32 %v89, %v125
    %vm128 = vcmask 123904
    %129 = vst.msk [vmem:[#allocation2] sm:$0x3] %vm128, %v127
    // Predicated region
    $region30: #{tpu_custom_call.1} parent=1 // pred_check
      %p130 = pneg %p59
    $region31: #{tpu_custom_call.1} parent=1 // pred_check_branch
      %132 = sbr.rel (%p130) target = $region33
    $region32: #{tpu_custom_call.1} parent=1 // pred_region
      %v133 = vld [vmem:[#allocation7] sm:$0x3]
      %v134 = vld [vmem:[#allocation2] sm:$0x3]
      %v135 = vmul.f32 %v133, %v133
      %v136 = vmul.f32 %v134, %v135
      %v137 = vsel %vm128, %v136, 0.0
      %138 = vadd.xlane.f32.xlu0 %v137
      %v139 = vpop.xlane.xlu0 %138
      %v140 = vmul.f32 %v139, 0.00012207031
      %vm141 = vcmask 1024
      %142 = vst.msk [vmem:[%s3] sm:$0x3] %vm141, %v140
    $region33: #{tpu_custom_call.1} parent=1 // pred_fallthru
      _
    // Predicated region
    $region34: #{tpu_custom_call.1} parent=1 // pred_check
      _
    $region35: #{tpu_custom_call.1} parent=1 // pred_check_branch
      %144 = sbr.rel (0) target = $region37
    $region36: #{tpu_custom_call.1} parent=1 // pred_region
      _
    $region37: #{tpu_custom_call.1} parent=1 // pred_fallthru
      _
    // Predicated region
    $region38: #{tpu_custom_call.1} parent=1 // pred_check
      _
    $region39: #{tpu_custom_call.1} parent=1 // pred_check_branch
      %146 = sbr.rel (0) target = $region41
    $region40: #{tpu_custom_call.1} parent=1 // pred_region
      _
    $region41: #{tpu_custom_call.1} parent=1 // pred_fallthru
      _
    %147 = vsyncpa [#allocation4], 1
    %148 = vsyncpa [#allocation6], 1

</llo_original>
